<compile_context>
chip_gen: v7x
topology: tpu7x:2x2x1
jax: 0.10.0
libtpu: 0.0.40
codegen_flags: <defaults>
</compile_context>

<pallas_src>
import time

import jax
import jax.numpy as jnp
from jax.experimental import pallas as pl
from jax.experimental.pallas import tpu as pltpu

# Process-level time base: keeps both device-side scalars small (f32-safe) while
# keeping the on-device subtraction non-degenerate (start_rel != 0 in general).
_TIME_BASE = time.time()


def _elapsed_kernel(start_ref, now_ref, elapsed_ref):
    # elapsed_time = now - start   (single scalar SMEM subtraction)
    elapsed_ref[0] = now_ref[0] - start_ref[0]


_SMEM = pl.BlockSpec(memory_space=pltpu.SMEM)

# Built + compiled exactly once; reused for every epoch (no per-call rebuild).
# input 1 (now_rel, fresh each call) is aliased to output 0: zero extra output
# buffer allocation / writeback per epoch.
_elapsed_call = jax.jit(
    pl.pallas_call(
        _elapsed_kernel,
        in_specs=[_SMEM, _SMEM],
        out_specs=_SMEM,
        out_shape=jax.ShapeDtypeStruct((1,), jnp.float32),
        input_output_aliases={1: 0},
    )
)


class TimingCallbackPallas:
    """Mirrors TimingCallback: stores total_epochs and a start timestamp."""

    def __init__(self, total_epochs):
        self.total_epochs = int(total_epochs)
        self.start_time = time.time()
        # Persistent device-resident start scalar: uploaded once, reused every epoch.
        self._start_dev = self._make_start_dev()

    def _make_start_dev(self):
        start_rel = self.start_time - _TIME_BASE  # float64 host rebasing (precision fix)
        return jax.device_put(jnp.asarray([start_rel], dtype=jnp.float32))

    def reset_start(self, start_time):
        """Reset the start timestamp (refreshes the persistent device copy once)."""
        self.start_time = float(start_time)
        self._start_dev = self._make_start_dev()

    def forward(self, epoch, total_epochs):
        # TODO(synk): time.time() and print() have no TPU equivalent; the clock
        # read, the f64 rebasing, the epoch+1 numerator and the formatted output
        # stay on the host. Only elapsed = now - start runs in the Pallas kernel.
        now_rel = time.time() - _TIME_BASE              # float64 host rebasing
        now_dev = jnp.asarray([now_rel], dtype=jnp.float32)  # single f32[1] H2D
        elapsed_dev = _elapsed_call(self._start_dev, now_dev)
        # Fused sync + transfer: exactly one device interaction per epoch.
        elapsed = float(jax.device_get(elapsed_dev)[0])
        print('Epoch [{}/{}] - time: {:.2f}s'.format(epoch + 1, total_epochs, elapsed))
        return elapsed_dev

    def on_epoch_end(self, epoch, logs=None):
        return self.forward(epoch, self.total_epochs)


if __name__ == "__main__":
    # Deterministic synthetic inputs (scalars only — the module has no tensors).
    key = jax.random.PRNGKey(0)
    total_epochs = 8
    epoch = int(jax.random.randint(key, (), 0, total_epochs))  # deterministic epoch index

    cb = TimingCallbackPallas(total_epochs)
    # Deterministic lower bound on elapsed time: shift start_time back 0.5 s
    # (refreshes the persistent device-side start scalar exactly once).
    cb.reset_start(cb.start_time - 0.5)

    elapsed_dev = cb.on_epoch_end(epoch)
    elapsed_dev = jax.block_until_ready(elapsed_dev)
    assert elapsed_dev.shape == (1,) and elapsed_dev.dtype == jnp.float32
    elapsed = float(jax.device_get(elapsed_dev)[0])
    # With host-side f64 rebasing the f32 result is exact to well under 1 ms,
    # so the 0.5 s shift must be visible.
    assert elapsed >= 0.5
    assert elapsed < 60.0  # sanity: not a catastrophic-cancellation artifact
    print("KERNEL_OK")
</pallas_src>

<mosaic_0001>
module attributes {stable_mosaic.version = 11 : i64} {
  func.func @_elapsed_kernel(%arg0: memref<1xf32, #tpu.memory_space<smem>>, %arg1: memref<1xf32, #tpu.memory_space<smem>>, %arg2: memref<1xf32, #tpu.memory_space<smem>>) attributes {dimension_semantics = [], scalar_prefetch = 0 : i64, scratch_operands = 0 : i64, tpu.core_type = #tpu.core_type<tc>} {
    %c0 = arith.constant 0 : index
    %0 = memref.load %arg1[%c0] : memref<1xf32, #tpu.memory_space<smem>>
    %c0_0 = arith.constant 0 : index
    %1 = memref.load %arg0[%c0_0] : memref<1xf32, #tpu.memory_space<smem>>
    %2 = arith.subf %0, %1 : f32
    %c0_1 = arith.constant 0 : index
    %3 = memref.load %arg2[%c0_1] : memref<1xf32, #tpu.memory_space<smem>>
    memref.store %2, %arg2[%c0_1] : memref<1xf32, #tpu.memory_space<smem>>
    return
  }
}

</mosaic_0001>

<llo_original>
// kernel: tpu_custom_call.1
$region0: #{tpu_custom_call.1}
  #allocation0 [shape = 'u32[]', space=smem, size = 0x4, offset = 0x4, fixed_abs, tag = 'smem constant byte address 0x4 - core index']
  #allocation1 [shape = 'u32[144,128]{1,0:T(1,128)}', space=vmem, size = 0x12000, scoped, tag = 'internal scratch']
  #allocation2 [shape = 'f32[1]{0:T(128)S(6)}', space=smem, size = 0x200, scoped, tag = 'scoped memory for tpu_custom_call.1']
  #allocation3 [shape = 'f32[1]{0:T(128)S(6)}', space=smem, size = 0x200, scoped, tag = 'scoped memory for tpu_custom_call.1']
  %s0 = inlined_call_operand.<no memory space> [shape: f32[1], index: 0, kind: input, shape index: {}]
  %s1 = inlined_call_operand.<no memory space> [shape: f32[1], index: 1, kind: input, shape index: {}, may-alias: {1,2}]
  %s2 = inlined_call_operand.hbm [shape: f32[1], index: 2, kind: output, shape index: {}, may-alias: {1,2}]
  %s3 = sld [smem:[#allocation0]]
  $region18: #{tpu_custom_call.1} parent=0
    _
  %s5 = ssub.s32 1, %s3
  %s6 = scalar_select 0, %s5, %s3
  %7 = sst [smem:[#allocation2]] %s0
  %8 = sst [smem:[#allocation3]] %s1
  $region1: #{tpu_custom_call.1} parent=0
    #allocation4 [shape = 'u8[512]{0}', space=smem, size = 0x200, scoped, tag = 'output window, operand 0, single buffered']
    #allocation5 [shape = 's32[1]{0}', space=sflag, size = 0x4, scoped, tag = 'scoped memory for tpu_custom_call.1']
    %9 = vsyncpa [#allocation5], 0
    // Predicated region
    $region2: #{tpu_custom_call.1} parent=1 // pred_check
      _
    $region3: #{tpu_custom_call.1} parent=1 // pred_check_branch
      %11 = sbr.rel (0) target = $region5
    $region4: #{tpu_custom_call.1} parent=1 // pred_region
      _
    $region5: #{tpu_custom_call.1} parent=1 // pred_fallthru
      _
    // Predicated region
    $region6: #{tpu_custom_call.1} parent=1 // pred_check
      _
    $region7: #{tpu_custom_call.1} parent=1 // pred_check_branch
      %13 = sbr.rel (0) target = $region9
    $region8: #{tpu_custom_call.1} parent=1 // pred_region
      _
    $region9: #{tpu_custom_call.1} parent=1 // pred_fallthru
      _
    %s14 = sld [smem:[#allocation3]]
    %s15 = sld [smem:[#allocation2]]
    %s16 = ssub.f32 %s14, %s15
    %s17 = scalar_lea.smem [#allocation4], 0
    %18 = sst [smem:[%s17]] %s16
    // Predicated region
    $region10: #{tpu_custom_call.1} parent=1 // pred_check
      _
    $region11: #{tpu_custom_call.1} parent=1 // pred_check_branch
      %20 = sbr.rel (0) target = $region13
    $region12: #{tpu_custom_call.1} parent=1 // pred_region
      %s22 = ssub.s32 16, 16
      %23 = vsyncadd [#allocation5], %s22
      %26 = dma.smem_to_hbm [#allocation4], 16, %s2, [#allocation5]
    $region13: #{tpu_custom_call.1} parent=1 // pred_fallthru
      _
    // Predicated region
    $region14: #{tpu_custom_call.1} parent=1 // pred_check
      _
    $region15: #{tpu_custom_call.1} parent=1 // pred_check_branch
      %28 = sbr.rel (0) target = $region17
    $region16: #{tpu_custom_call.1} parent=1 // pred_region
      %29 = dma.done [#allocation5], 16
    $region17: #{tpu_custom_call.1} parent=1 // pred_fallthru
      _
    %30 = sfence
    %31 = vsyncpa [#allocation5], 1

</llo_original>
